<compile_context>
chip_gen: v5e
topology: v5e:2x2
jax: 0.10.0
libtpu: 0.0.40
codegen_flags: <defaults>
</compile_context>

<pallas_src>
import functools

import jax
import jax.numpy as jnp
from jax.experimental import pallas as pl
from jax.experimental.pallas import tpu as pltpu


def _round_up(x: int, m: int) -> int:
    return ((x + m - 1) // m) * m


def _mlp_kernel(x_ref, w1_ref, b1_ref, w2_ref, b2_ref, w3_ref, b3_ref, o_ref, *, k_pad):
    # x_ref: (TILE_B, in_dim) f32 streamed tile; weights bf16 (K/hidden lane-padded);
    # biases f32 (1, N). Cast + K-pad happen here so HBM only ever sees unpadded f32 x.
    x = x_ref[...].astype(jnp.bfloat16)
    if k_pad:
        x = jnp.concatenate(
            [x, jnp.zeros((x.shape[0], k_pad), x.dtype)], axis=-1)

    # Layer 1: bf16 MXU matmul, f32 accumulate; bias + ReLU in f32.
    h = jnp.dot(x, w1_ref[...], preferred_element_type=jnp.float32) + b1_ref[...]
    h = jnp.maximum(h, 0.0).astype(jnp.bfloat16)

    # Layer 2.
    h = jnp.dot(h, w2_ref[...], preferred_element_type=jnp.float32) + b2_ref[...]
    h = jnp.maximum(h, 0.0).astype(jnp.bfloat16)

    # Layer 3 (no activation); store unpadded f32 tile.
    out = jnp.dot(h, w3_ref[...], preferred_element_type=jnp.float32) + b3_ref[...]
    o_ref[...] = out.astype(o_ref.dtype)


def _vmem_budget_bytes() -> int:
    """Generation-aware VMEM budget: ~70% of physical capacity with headroom."""
    try:
        cap = int(pltpu.get_tpu_info().vmem_capacity_bytes)
    except Exception:
        cap = 64 * 1024 * 1024  # safe default (v7x physical size)
    return max(int(cap * 0.7), 16 * 1024 * 1024)


def _pick_tile_b(batch, in_dim, hid_pad, clip_dim, budget, weights_bytes) -> int:
    """Batch tile: multiple of 16, fits the VMEM budget, keeps the grid deep."""
    # Per-row VMEM: double-buffered f32 x/out tiles + f32/bf16 intermediates.
    per_row = (2 * in_dim * 4            # double-buffered f32 x tile
               + 2 * clip_dim * 4        # double-buffered f32 out tile
               + 4 * hid_pad * 4         # f32 hidden intermediates
               + _round_up(in_dim, 128) * 2)  # in-kernel bf16 padded x
    avail = max(budget - weights_bytes, per_row * 16)
    tile = (avail // per_row) // 16 * 16
    tile = max(16, min(512, tile))       # cap so large batches keep a deep grid
    if batch >= 8 * 16:
        # Keep >= ~8 grid steps so activation DMA pipelines under the matmuls
        # and both v7x TensorCores get work.
        tile = min(tile, max(16, _round_up(pl.cdiv(batch, 8), 16)))
    if batch <= tile:
        tile = batch                     # single full-batch block (block == array dim)
    return int(tile)


def concept2clip_forward(x, params):
    """x: (B, n_concepts, 3, 3) float32. Returns (B, clip_dim) float32."""
    w1, b1, w2, b2, w3, b3 = params
    B = x.shape[0]
    x_flat = x.reshape(B, -1)            # same semantics as torch .view(B, -1)
    in_dim = x_flat.shape[1]
    hid_dim = w1.shape[1]
    clip_dim = w3.shape[1]

    in_pad = _round_up(in_dim, 128)      # weight K lane width (x padded in-kernel)
    hid_pad = _round_up(hid_dim, 128)    # 128-aligned, NOT 256: kernel is BW bound

    budget = _vmem_budget_bytes()
    weights_bytes = (2 * (in_pad * hid_pad + hid_pad * hid_pad + hid_pad * clip_dim)
                     + 4 * (2 * hid_pad + clip_dim))
    if weights_bytes * 2 > budget:
        # TODO(synk): hidden/K-tiled fallback (extra "arbitrary" grid axis + f32
        # accumulator scratch) for configs whose weights cannot stay VMEM-resident.
        pass

    tile_b = _pick_tile_b(B, in_dim, hid_pad, clip_dim, budget, weights_bytes)
    grid = (pl.cdiv(B, tile_b),)

    def pad2(a, rows, cols, dtype):
        a = a.astype(dtype)
        pr, pc = rows - a.shape[0], cols - a.shape[1]
        return jnp.pad(a, ((0, pr), (0, pc))) if (pr or pc) else a

    # Weights/biases are tiny: pad them once here. Activations are NOT copied/padded.
    w1p = pad2(w1, in_pad, hid_pad, jnp.bfloat16)
    w2p = pad2(w2, hid_pad, hid_pad, jnp.bfloat16)
    w3p = pad2(w3, hid_pad, clip_dim, jnp.bfloat16)
    b1p = pad2(b1.reshape(1, -1), 1, hid_pad, jnp.float32)
    b2p = pad2(b2.reshape(1, -1), 1, hid_pad, jnp.float32)
    b3p = pad2(b3.reshape(1, -1), 1, clip_dim, jnp.float32)

    kernel = functools.partial(_mlp_kernel, k_pad=in_pad - in_dim)

    flops = 2 * B * (in_pad * hid_pad + hid_pad * hid_pad + hid_pad * clip_dim)
    bytes_accessed = (B * in_dim * 4 + B * clip_dim * 4
                      + (w1p.size + w2p.size + w3p.size) * 2
                      + (b1p.size + b2p.size + b3p.size) * 4)

    def run(single_buffer_weights: bool):
        def const_spec(shape):
            idx = lambda i: (0,) * len(shape)
            if single_buffer_weights:
                # Constant block index -> never re-fetched; one buffer saves VMEM.
                return pl.BlockSpec(shape, idx, pipeline_mode=pl.Buffered(1))
            return pl.BlockSpec(shape, idx)

        return pl.pallas_call(
            kernel,
            out_shape=jax.ShapeDtypeStruct((B, clip_dim), jnp.float32),
            grid=grid,
            in_specs=[
                pl.BlockSpec((tile_b, in_dim), lambda i: (i, 0)),  # streamed f32 x
                const_spec((in_pad, hid_pad)),                     # VMEM-resident weights
                const_spec((1, hid_pad)),
                const_spec((hid_pad, hid_pad)),
                const_spec((1, hid_pad)),
                const_spec((hid_pad, clip_dim)),
                const_spec((1, clip_dim)),
            ],
            out_specs=pl.BlockSpec((tile_b, clip_dim), lambda i: (i, 0)),
            compiler_params=pltpu.CompilerParams(
                dimension_semantics=("parallel",),
                vmem_limit_bytes=budget,
            ),
            cost_estimate=pl.CostEstimate(
                flops=flops, transcendentals=0, bytes_accessed=bytes_accessed),
        )(x_flat, w1p, b1p, w2p, b2p, w3p, b3p)

    try:
        return run(True)
    except Exception:
        # Fallback if this Pallas build rejects pl.Buffered(1) inside pallas_call.
        return run(False)


def init_params(key, n_concepts, clip_dim):
    in_dim = n_concepts * 3 * 3
    hidden_dim = (in_dim + clip_dim) // 2
    ks = jax.random.split(key, 6)

    def linear(kw, kb, fan_in, fan_out):
        # Torch-default-like uniform init; weights stored (in, out).
        bound = 1.0 / jnp.sqrt(fan_in)
        w = jax.random.uniform(kw, (fan_in, fan_out), jnp.float32, -bound, bound)
        b = jax.random.uniform(kb, (1, fan_out), jnp.float32, -bound, bound)
        return w, b

    w1, b1 = linear(ks[0], ks[1], in_dim, hidden_dim)
    w2, b2 = linear(ks[2], ks[3], hidden_dim, hidden_dim)
    w3, b3 = linear(ks[4], ks[5], hidden_dim, clip_dim)
    return (w1, b1, w2, b2, w3, b3)


def reference_forward(x, params):
    w1, b1, w2, b2, w3, b3 = params
    h = x.reshape(x.shape[0], -1)
    h = jnp.maximum(h @ w1 + b1, 0.0)
    h = jnp.maximum(h @ w2 + b2, 0.0)
    return h @ w3 + b3


if __name__ == "__main__":
    key = jax.random.PRNGKey(0)
    k_x, k_p = jax.random.split(key)

    batch = 2
    n_concepts = 4
    clip_dim = 32

    x = jax.random.normal(k_x, (batch, n_concepts, 3, 3), dtype=jnp.float32)
    params = init_params(k_p, n_concepts, clip_dim)

    out = jax.block_until_ready(concept2clip_forward(x, params))
    ref = reference_forward(x, params)

    assert out.shape == (batch, clip_dim)
    # bf16 matmul inputs with f32 accumulation -> bf16-appropriate tolerance.
    assert jnp.allclose(out, ref, atol=5e-2, rtol=5e-2), float(jnp.max(jnp.abs(out - ref)))

    print("KERNEL_OK")
</pallas_src>

<mosaic_0001>
module attributes {stable_mosaic.version = 11 : i64} {
  func.func @_mlp_kernel(%arg0: i32, %arg1: memref<2x36xf32, #tpu.memory_space<vmem>>, %arg2: memref<128x128xbf16, #tpu.memory_space<vmem>>, %arg3: memref<1x128xf32, #tpu.memory_space<vmem>>, %arg4: memref<128x128xbf16, #tpu.memory_space<vmem>>, %arg5: memref<1x128xf32, #tpu.memory_space<vmem>>, %arg6: memref<128x32xbf16, #tpu.memory_space<vmem>>, %arg7: memref<1x32xf32, #tpu.memory_space<vmem>>, %arg8: memref<2x32xf32, #tpu.memory_space<vmem>>) attributes {dimension_semantics = [#tpu.dimension_semantics<parallel>], iteration_bounds = array<i64: 1>, scalar_prefetch = 0 : i64, scratch_operands = 0 : i64, tpu.core_type = #tpu.core_type<tc>, window_params = [{transform_indices = @transform_0, window_bounds = array<i64: 2, 36>}, {pipeline_mode = #tpu.pipeline_mode<synchronous>, transform_indices = @transform_1, window_bounds = array<i64: 128, 128>}, {pipeline_mode = #tpu.pipeline_mode<synchronous>, transform_indices = @transform_2, window_bounds = array<i64: 1, 128>}, {pipeline_mode = #tpu.pipeline_mode<synchronous>, transform_indices = @transform_3, window_bounds = array<i64: 128, 128>}, {pipeline_mode = #tpu.pipeline_mode<synchronous>, transform_indices = @transform_4, window_bounds = array<i64: 1, 128>}, {pipeline_mode = #tpu.pipeline_mode<synchronous>, transform_indices = @transform_5, window_bounds = array<i64: 128, 32>}, {pipeline_mode = #tpu.pipeline_mode<synchronous>, transform_indices = @transform_6, window_bounds = array<i64: 1, 32>}, {transform_indices = @transform_7, window_bounds = array<i64: 2, 32>}]} {
    %c0 = arith.constant 0 : index
    %c0_0 = arith.constant 0 : index
    %0 = vector.load %arg1[%c0, %c0_0] : memref<2x36xf32, #tpu.memory_space<vmem>>, vector<2x36xf32>
    %1 = arith.truncf %0 : vector<2x36xf32> to vector<2x36xbf16>
    %cst = arith.constant 0.000000e+00 : bf16
    %2 = vector.broadcast %cst : bf16 to vector<2x92xbf16>
    %3 = tpu.concatenate %1, %2 in 1 : vector<2x36xbf16>, vector<2x92xbf16> -> vector<2x128xbf16>
    %c0_1 = arith.constant 0 : index
    %c0_2 = arith.constant 0 : index
    %4 = vector.load %arg2[%c0_1, %c0_2] : memref<128x128xbf16, #tpu.memory_space<vmem>>, vector<128x128xbf16>
    %cst_3 = arith.constant dense<0.000000e+00> : vector<2x128xf32>
    %5 = tpu.matmul %3, %4, %cst_3 {dimension_numbers = #tpu.dot_dimension_numbers<[1], [0], [0], [1], [0, 0, 1, 1], [], []>} : vector<2x128xbf16>, vector<128x128xbf16>, vector<2x128xf32> -> vector<2x128xf32>
    %c0_4 = arith.constant 0 : index
    %c0_5 = arith.constant 0 : index
    %6 = vector.load %arg3[%c0_4, %c0_5] : memref<1x128xf32, #tpu.memory_space<vmem>>, vector<1x128xf32>
    %7 = vector.broadcast %6 : vector<1x128xf32> to vector<2x128xf32>
    %8 = arith.addf %5, %7 : vector<2x128xf32>
    %cst_6 = arith.constant 0.000000e+00 : f32
    %9 = vector.broadcast %cst_6 : f32 to vector<2x128xf32>
    %10 = arith.maximumf %8, %9 : vector<2x128xf32>
    %11 = arith.truncf %10 : vector<2x128xf32> to vector<2x128xbf16>
    %c0_7 = arith.constant 0 : index
    %c0_8 = arith.constant 0 : index
    %12 = vector.load %arg4[%c0_7, %c0_8] : memref<128x128xbf16, #tpu.memory_space<vmem>>, vector<128x128xbf16>
    %cst_9 = arith.constant dense<0.000000e+00> : vector<2x128xf32>
    %13 = tpu.matmul %11, %12, %cst_9 {dimension_numbers = #tpu.dot_dimension_numbers<[1], [0], [0], [1], [0, 0, 1, 1], [], []>} : vector<2x128xbf16>, vector<128x128xbf16>, vector<2x128xf32> -> vector<2x128xf32>
    %c0_10 = arith.constant 0 : index
    %c0_11 = arith.constant 0 : index
    %14 = vector.load %arg5[%c0_10, %c0_11] : memref<1x128xf32, #tpu.memory_space<vmem>>, vector<1x128xf32>
    %15 = vector.broadcast %14 : vector<1x128xf32> to vector<2x128xf32>
    %16 = arith.addf %13, %15 : vector<2x128xf32>
    %cst_12 = arith.constant 0.000000e+00 : f32
    %17 = vector.broadcast %cst_12 : f32 to vector<2x128xf32>
    %18 = arith.maximumf %16, %17 : vector<2x128xf32>
    %19 = arith.truncf %18 : vector<2x128xf32> to vector<2x128xbf16>
    %c0_13 = arith.constant 0 : index
    %c0_14 = arith.constant 0 : index
    %20 = vector.load %arg6[%c0_13, %c0_14] : memref<128x32xbf16, #tpu.memory_space<vmem>>, vector<128x32xbf16>
    %cst_15 = arith.constant dense<0.000000e+00> : vector<2x32xf32>
    %21 = tpu.matmul %19, %20, %cst_15 {dimension_numbers = #tpu.dot_dimension_numbers<[1], [0], [0], [1], [0, 0, 1, 1], [], []>} : vector<2x128xbf16>, vector<128x32xbf16>, vector<2x32xf32> -> vector<2x32xf32>
    %c0_16 = arith.constant 0 : index
    %c0_17 = arith.constant 0 : index
    %22 = vector.load %arg7[%c0_16, %c0_17] : memref<1x32xf32, #tpu.memory_space<vmem>>, vector<1x32xf32>
    %23 = vector.broadcast %22 : vector<1x32xf32> to vector<2x32xf32>
    %24 = arith.addf %21, %23 : vector<2x32xf32>
    %c0_18 = arith.constant 0 : index
    %c0_19 = arith.constant 0 : index
    %25 = vector.load %arg8[%c0_18, %c0_19] : memref<2x32xf32, #tpu.memory_space<vmem>>, vector<2x32xf32>
    tpu.vector_store %arg8[%c0_18, %c0_19], %24 {strides = array<i32>} : memref<2x32xf32, #tpu.memory_space<vmem>>, vector<2x32xf32>,
    return
  }
  func.func @transform_0(%arg0: i32) -> (i32, i32) {
    %c0_i32 = arith.constant 0 : i32
    %c0_i32_0 = arith.constant 0 : i32
    return %arg0, %c0_i32 : i32, i32
  }
  func.func @transform_1(%arg0: i32) -> (i32, i32) {
    %c0_i32 = arith.constant 0 : i32
    %c0_i32_0 = arith.constant 0 : i32
    %c0_i32_1 = arith.constant 0 : i32
    return %c0_i32, %c0_i32_0 : i32, i32
  }
  func.func @transform_2(%arg0: i32) -> (i32, i32) {
    %c0_i32 = arith.constant 0 : i32
    %c0_i32_0 = arith.constant 0 : i32
    %c0_i32_1 = arith.constant 0 : i32
    return %c0_i32, %c0_i32_0 : i32, i32
  }
  func.func @transform_3(%arg0: i32) -> (i32, i32) {
    %c0_i32 = arith.constant 0 : i32
    %c0_i32_0 = arith.constant 0 : i32
    %c0_i32_1 = arith.constant 0 : i32
    return %c0_i32, %c0_i32_0 : i32, i32
  }
  func.func @transform_4(%arg0: i32) -> (i32, i32) {
    %c0_i32 = arith.constant 0 : i32
    %c0_i32_0 = arith.constant 0 : i32
    %c0_i32_1 = arith.constant 0 : i32
    return %c0_i32, %c0_i32_0 : i32, i32
  }
  func.func @transform_5(%arg0: i32) -> (i32, i32) {
    %c0_i32 = arith.constant 0 : i32
    %c0_i32_0 = arith.constant 0 : i32
    %c0_i32_1 = arith.constant 0 : i32
    return %c0_i32, %c0_i32_0 : i32, i32
  }
  func.func @transform_6(%arg0: i32) -> (i32, i32) {
    %c0_i32 = arith.constant 0 : i32
    %c0_i32_0 = arith.constant 0 : i32
    %c0_i32_1 = arith.constant 0 : i32
    return %c0_i32, %c0_i32_0 : i32, i32
  }
  func.func @transform_7(%arg0: i32) -> (i32, i32) {
    %c0_i32 = arith.constant 0 : i32
    %c0_i32_0 = arith.constant 0 : i32
    return %arg0, %c0_i32 : i32, i32
  }
}

module attributes {stable_mosaic.version = 11 : i64} {
  func.func @_mlp_kernel(%arg0: i32, %arg1: memref<2x36xf32, #tpu.memory_space<vmem>>, %arg2: memref<128x128xbf16, #tpu.memory_space<vmem>>, %arg3: memref<1x128xf32, #tpu.memory_space<vmem>>, %arg4: memref<128x128xbf16, #tpu.memory_space<vmem>>, %arg5: memref<1x128xf32, #tpu.memory_space<vmem>>, %arg6: memref<128x32xbf16, #tpu.memory_space<vmem>>, %arg7: memref<1x32xf32, #tpu.memory_space<vmem>>, %arg8: memref<2x32xf32, #tpu.memory_space<vmem>>) attributes {dimension_semantics = [#tpu.dimension_semantics<parallel>], iteration_bounds = array<i64: 1>, scalar_prefetch = 0 : i64, scratch_operands = 0 : i64, tpu.core_type = #tpu.core_type<tc>, window_params = [{transform_indices = @transform_0, window_bounds = array<i64: 2, 36>}, {pipeline_mode = #tpu.pipeline_mode<synchronous>, transform_indices = @transform_1, window_bounds = array<i64: 128, 128>}, {pipeline_mode = #tpu.pipeline_mode<synchronous>, transform_indices = @transform_2, window_bounds = array<i64: 1, 128>}, {pipeline_mode = #tpu.pipeline_mode<synchronous>, transform_indices = @transform_3, window_bounds = array<i64: 128, 128>}, {pipeline_mode = #tpu.pipeline_mode<synchronous>, transform_indices = @transform_4, window_bounds = array<i64: 1, 128>}, {pipeline_mode = #tpu.pipeline_mode<synchronous>, transform_indices = @transform_5, window_bounds = array<i64: 128, 32>}, {pipeline_mode = #tpu.pipeline_mode<synchronous>, transform_indices = @transform_6, window_bounds = array<i64: 1, 32>}, {transform_indices = @transform_7, window_bounds = array<i64: 2, 32>}]} {
    %c0 = arith.constant 0 : index
    %c0_0 = arith.constant 0 : index
    %0 = vector.load %arg1[%c0, %c0_0] : memref<2x36xf32, #tpu.memory_space<vmem>>, vector<2x36xf32>
    %1 = arith.truncf %0 : vector<2x36xf32> to vector<2x36xbf16>
    %cst = arith.constant 0.000000e+00 : bf16
    %2 = vector.broadcast %cst : bf16 to vector<2x92xbf16>
    %3 = tpu.concatenate %1, %2 in 1 : vector<2x36xbf16>, vector<2x92xbf16> -> vector<2x128xbf16>
    %c0_1 = arith.constant 0 : index
    %c0_2 = arith.constant 0 : index
    %4 = vector.load %arg2[%c0_1, %c0_2] : memref<128x128xbf16, #tpu.memory_space<vmem>>, vector<128x128xbf16>
    %cst_3 = arith.constant dense<0.000000e+00> : vector<2x128xf32>
    %5 = tpu.matmul %3, %4, %cst_3 {dimension_numbers = #tpu.dot_dimension_numbers<[1], [0], [0], [1], [0, 0, 1, 1], [], []>} : vector<2x128xbf16>, vector<128x128xbf16>, vector<2x128xf32> -> vector<2x128xf32>
    %c0_4 = arith.constant 0 : index
    %c0_5 = arith.constant 0 : index
    %6 = vector.load %arg3[%c0_4, %c0_5] : memref<1x128xf32, #tpu.memory_space<vmem>>, vector<1x128xf32>
    %7 = vector.broadcast %6 : vector<1x128xf32> to vector<2x128xf32>
    %8 = arith.addf %5, %7 : vector<2x128xf32>
    %cst_6 = arith.constant 0.000000e+00 : f32
    %9 = vector.broadcast %cst_6 : f32 to vector<2x128xf32>
    %10 = arith.maximumf %8, %9 : vector<2x128xf32>
    %11 = arith.truncf %10 : vector<2x128xf32> to vector<2x128xbf16>
    %c0_7 = arith.constant 0 : index
    %c0_8 = arith.constant 0 : index
    %12 = vector.load %arg4[%c0_7, %c0_8] : memref<128x128xbf16, #tpu.memory_space<vmem>>, vector<128x128xbf16>
    %cst_9 = arith.constant dense<0.000000e+00> : vector<2x128xf32>
    %13 = tpu.matmul %11, %12, %cst_9 {dimension_numbers = #tpu.dot_dimension_numbers<[1], [0], [0], [1], [0, 0, 1, 1], [], []>} : vector<2x128xbf16>, vector<128x128xbf16>, vector<2x128xf32> -> vector<2x128xf32>
    %c0_10 = arith.constant 0 : index
    %c0_11 = arith.constant 0 : index
    %14 = vector.load %arg5[%c0_10, %c0_11] : memref<1x128xf32, #tpu.memory_space<vmem>>, vector<1x128xf32>
    %15 = vector.broadcast %14 : vector<1x128xf32> to vector<2x128xf32>
    %16 = arith.addf %13, %15 : vector<2x128xf32>
    %cst_12 = arith.constant 0.000000e+00 : f32
    %17 = vector.broadcast %cst_12 : f32 to vector<2x128xf32>
    %18 = arith.maximumf %16, %17 : vector<2x128xf32>
    %19 = arith.truncf %18 : vector<2x128xf32> to vector<2x128xbf16>
    %c0_13 = arith.constant 0 : index
    %c0_14 = arith.constant 0 : index
    %20 = vector.load %arg6[%c0_13, %c0_14] : memref<128x32xbf16, #tpu.memory_space<vmem>>, vector<128x32xbf16>
    %cst_15 = arith.constant dense<0.000000e+00> : vector<2x32xf32>
    %21 = tpu.matmul %19, %20, %cst_15 {dimension_numbers = #tpu.dot_dimension_numbers<[1], [0], [0], [1], [0, 0, 1, 1], [], []>} : vector<2x128xbf16>, vector<128x32xbf16>, vector<2x32xf32> -> vector<2x32xf32>
    %c0_16 = arith.constant 0 : index
    %c0_17 = arith.constant 0 : index
    %22 = vector.load %arg7[%c0_16, %c0_17] : memref<1x32xf32, #tpu.memory_space<vmem>>, vector<1x32xf32>
    %23 = vector.broadcast %22 : vector<1x32xf32> to vector<2x32xf32>
    %24 = arith.addf %21, %23 : vector<2x32xf32>
    %c0_18 = arith.constant 0 : index
    %c0_19 = arith.constant 0 : index
    %25 = vector.load %arg8[%c0_18, %c0_19] : memref<2x32xf32, #tpu.memory_space<vmem>>, vector<2x32xf32>
    tpu.vector_store %arg8[%c0_18, %c0_19], %24 {strides = array<i32>} : memref<2x32xf32, #tpu.memory_space<vmem>>, vector<2x32xf32>,
    return
  }
  func.func @transform_0(%arg0: i32) -> (i32, i32) {
    %c0_i32 = arith.constant 0 : i32
    %c0_i32_0 = arith.constant 0 : i32
    return %arg0, %c0_i32 : i32, i32
  }
  func.func @transform_1(%arg0: i32) -> (i32, i32) {
    %c0_i32 = arith.constant 0 : i32
    %c0_i32_0 = arith.constant 0 : i32
    %c0_i32_1 = arith.constant 0 : i32
    return %c0_i32, %c0_i32_0 : i32, i32
  }
  func.func @transform_2(%arg0: i32) -> (i32, i32) {
    %c0_i32 = arith.constant 0 : i32
    %c0_i32_0 = arith.constant 0 : i32
    %c0_i32_1 = arith.constant 0 : i32
    return %c0_i32, %c0_i32_0 : i32, i32
  }
  func.func @transform_3(%arg0: i32) -> (i32, i32) {
    %c0_i32 = arith.constant 0 : i32
    %c0_i32_0 = arith.constant 0 : i32
    %c0_i32_1 = arith.constant 0 : i32
    return %c0_i32, %c0_i32_0 : i32, i32
  }
  func.func @transform_4(%arg0: i32) -> (i32, i32) {
    %c0_i32 = arith.constant 0 : i32
    %c0_i32_0 = arith.constant 0 : i32
    %c0_i32_1 = arith.constant 0 : i32
    return %c0_i32, %c0_i32_0 : i32, i32
  }
  func.func @transform_5(%arg0: i32) -> (i32, i32) {
    %c0_i32 = arith.constant 0 : i32
    %c0_i32_0 = arith.constant 0 : i32
    %c0_i32_1 = arith.constant 0 : i32
    return %c0_i32, %c0_i32_0 : i32, i32
  }
  func.func @transform_6(%arg0: i32) -> (i32, i32) {
    %c0_i32 = arith.constant 0 : i32
    %c0_i32_0 = arith.constant 0 : i32
    %c0_i32_1 = arith.constant 0 : i32
    return %c0_i32, %c0_i32_0 : i32, i32
  }
  func.func @transform_7(%arg0: i32) -> (i32, i32) {
    %c0_i32 = arith.constant 0 : i32
    %c0_i32_0 = arith.constant 0 : i32
    return %arg0, %c0_i32 : i32, i32
  }
}

</mosaic_0001>

<llo_original>
// kernel: tpu_custom_call.1
$region0: #{tpu_custom_call.1}
  #allocation0 [shape = 'u32[]', space=smem, size = 0x4, offset = 0x4, fixed_abs, tag = 'smem constant byte address 0x4 - core index']
  #allocation1 [shape = 'u32[72,128]{1,0:T(1,128)}', space=vmem, size = 0x9000, scoped, tag = 'internal scratch']
  %s0 = inlined_call_operand.vmem [shape: f32[2,36], index: 0, kind: input, shape index: {}]
  %s1 = inlined_call_operand.vmem [shape: bf16[128,128], index: 1, kind: input, shape index: {}]
  %s2 = inlined_call_operand.vmem [shape: f32[1,128], index: 2, kind: input, shape index: {}]
  %s3 = inlined_call_operand.hbm [shape: bf16[128,128], index: 3, kind: input, shape index: {}]
  %s4 = inlined_call_operand.vmem [shape: f32[1,128], index: 4, kind: input, shape index: {}]
  %s5 = inlined_call_operand.vmem [shape: bf16[128,32], index: 5, kind: input, shape index: {}]
  %s6 = inlined_call_operand.vmem [shape: f32[1,32], index: 6, kind: input, shape index: {}]
  %s7 = inlined_call_operand.hbm [shape: f32[2,32], index: 7, kind: output, shape index: {}]
  %s8 = sld [smem:[#allocation0]]
  $region42: #{tpu_custom_call.1} parent=0
    _
  %s10 = ssub.s32 1, %s8
  %s11 = scalar_select 0, %s10, %s8
  $region1: #{tpu_custom_call.1} parent=0
    #allocation2 [shape = 'u8[32768]{0}', space=vmem, size = 0x8000, scoped, tag = 'input window, operand 3, single buffered']
    #allocation3 [shape = 's32[1]{0}', space=sflag, size = 0x4, scoped, tag = 'scoped memory for tpu_custom_call.1']
    #allocation4 [shape = 's32[1]{0}', space=sflag, size = 0x4, scoped, tag = 'scoped memory for tpu_custom_call.1']
    #allocation5 [shape = 'u8[1024]{0}', space=vmem, size = 0x400, scoped, tag = 'output window, operand 0, single buffered']
    %12 = vsyncpa [#allocation3], 0
    %13 = vsyncpa [#allocation4], 0
    // Predicated region
    $region2: #{tpu_custom_call.1} parent=1 // pred_check
      _
    $region3: #{tpu_custom_call.1} parent=1 // pred_check_branch
      %15 = sbr.rel (0) target = $region5
    $region4: #{tpu_custom_call.1} parent=1 // pred_region
      _
    $region5: #{tpu_custom_call.1} parent=1 // pred_fallthru
      _
    // Predicated region
    $region6: #{tpu_custom_call.1} parent=1 // pred_check
      _
    $region7: #{tpu_custom_call.1} parent=1 // pred_check_branch
      %17 = sbr.rel (0) target = $region9
    $region8: #{tpu_custom_call.1} parent=1 // pred_region
      _
    $region9: #{tpu_custom_call.1} parent=1 // pred_fallthru
      _
    // Predicated region
    $region10: #{tpu_custom_call.1} parent=1 // pred_check
      _
    $region11: #{tpu_custom_call.1} parent=1 // pred_check_branch
      %19 = sbr.rel (0) target = $region13
    $region12: #{tpu_custom_call.1} parent=1 // pred_region
      _
    $region13: #{tpu_custom_call.1} parent=1 // pred_fallthru
      _
    // Predicated region
    $region14: #{tpu_custom_call.1} parent=1 // pred_check
      _
    $region15: #{tpu_custom_call.1} parent=1 // pred_check_branch
      %21 = sbr.rel (0) target = $region17
    $region16: #{tpu_custom_call.1} parent=1 // pred_region
      %23 = vsyncadd [#allocation3], 0
      %s24 = sshll.u32 %s3, 4
      %s25 = int_to_ptr.hbm [resolvable:$true] %s24
      %s26 = sshll.u32 [#allocation2], 4
      %s27 = int_to_ptr.vmem [resolvable:$true] %s26
      %32 = dma.hbm_to_vmem [thread:$0]  %s25, 1024, %s27, [#allocation3], 64, 64, 4
    $region17: #{tpu_custom_call.1} parent=1 // pred_fallthru
      _
    // Predicated region
    $region18: #{tpu_custom_call.1} parent=1 // pred_check
      _
    $region19: #{tpu_custom_call.1} parent=1 // pred_check_branch
      %34 = sbr.rel (0) target = $region21
    $region20: #{tpu_custom_call.1} parent=1 // pred_region
      _
    $region21: #{tpu_custom_call.1} parent=1 // pred_fallthru
      _
    // Predicated region
    $region22: #{tpu_custom_call.1} parent=1 // pred_check
      _
    $region23: #{tpu_custom_call.1} parent=1 // pred_check_branch
      %36 = sbr.rel (0) target = $region25
    $region24: #{tpu_custom_call.1} parent=1 // pred_region
      _
    $region25: #{tpu_custom_call.1} parent=1 // pred_fallthru
      _
    // Predicated region
    $region26: #{tpu_custom_call.1} parent=1 // pred_check
      _
    $region27: #{tpu_custom_call.1} parent=1 // pred_check_branch
      %38 = sbr.rel (0) target = $region29
    $region28: #{tpu_custom_call.1} parent=1 // pred_region
      _
    $region29: #{tpu_custom_call.1} parent=1 // pred_fallthru
      _
    // Predicated region
    $region30: #{tpu_custom_call.1} parent=1 // pred_check
      _
    $region31: #{tpu_custom_call.1} parent=1 // pred_check_branch
      %40 = sbr.rel (0) target = $region33
    $region32: #{tpu_custom_call.1} parent=1 // pred_region
      %42 = dma.done [#allocation3], 1024
    $region33: #{tpu_custom_call.1} parent=1 // pred_fallthru
      _
    %v44 = vld [vmem:[%s0] sm:$0x3]
    %v45 = vpack.c.bf16 %v44, %v44
    %vm46 = vcmask 293888
    %v49 = vsel %vm46, %v45, 0
    %v51 = vld [vmem:[%s1] sm:$0xf]
    %v52 = vld [vmem:[%s1 + $0x4] sm:$0xf]
    %v53 = vld [vmem:[%s1 + $0x8] sm:$0xf]
    %v54 = vld [vmem:[%s1 + $0xc] sm:$0xf]
    %v55 = vld [vmem:[%s1 + $0x10] sm:$0xf]
    %v56 = vld [vmem:[%s1 + $0x14] sm:$0xf]
    %v57 = vld [vmem:[%s1 + $0x18] sm:$0xf]
    %v58 = vld [vmem:[%s1 + $0x1c] sm:$0xf]
    %v59 = vld [vmem:[%s1 + $0x20] sm:$0xf]
    %v60 = vld [vmem:[%s1 + $0x24] sm:$0xf]
    %v61 = vld [vmem:[%s1 + $0x28] sm:$0xf]
    %v62 = vld [vmem:[%s1 + $0x2c] sm:$0xf]
    %v63 = vld [vmem:[%s1 + $0x30] sm:$0xf]
    %v64 = vld [vmem:[%s1 + $0x34] sm:$0xf]
    %v65 = vld [vmem:[%s1 + $0x38] sm:$0xf]
    %v66 = vld [vmem:[%s1 + $0x3c] sm:$0xf]
    %v67 = vld [vmem:[%s2] sm:$0x1]
    %v69 = vperm.slane %v67, 0
    %v87 = vunpack.c.l.b16 %v51
    %v88 = vunpack.c.l.b16 %v52
    %v89 = vunpack.c.l.b16 %v53
    %v90 = vunpack.c.l.b16 %v54
    %v91 = vunpack.c.l.b16 %v55
    %v92 = vunpack.c.l.b16 %v56
    %v93 = vunpack.c.l.b16 %v57
    %v94 = vunpack.c.l.b16 %v58
    %v95 = vunpack.c.l.b16 %v59
    %v96 = vunpack.c.l.b16 %v60
    %v97 = vunpack.c.l.b16 %v61
    %v98 = vunpack.c.l.b16 %v62
    %v99 = vunpack.c.l.b16 %v63
    %v100 = vunpack.c.l.b16 %v64
    %v101 = vunpack.c.l.b16 %v65
    %v102 = vunpack.c.l.b16 %v66
    %v103 = vpack.c.b16 %v88, %v87
    %v104 = vpack.c.b16 %v90, %v89
    %v105 = vpack.c.b16 %v92, %v91
    %v106 = vpack.c.b16 %v94, %v93
    %v107 = vpack.c.b16 %v96, %v95
    %v108 = vpack.c.b16 %v98, %v97
    %v109 = vpack.c.b16 %v100, %v99
    %v110 = vpack.c.b16 %v102, %v101
    %119 = vmatpush.bf16.msra.mxu0 %v110
    %120 = vmatpush.bf16.msra.mxu0 %v109
    %121 = vmatpush.bf16.msra.mxu0 %v108
    %122 = vmatpush.bf16.msra.mxu0 %v107
    %123 = vmatpush.bf16.msra.mxu0 %v106
    %124 = vmatpush.bf16.msra.mxu0 %v105
    %125 = vmatpush.bf16.msra.mxu0 %v104
    %126 = vmatpush.bf16.msra.mxu0 %v103
    %127 = vmatmul.bf16.gmra.mxu0 %v49
    %v128 = vpop.f32.mrf.mxu0
    %v129 = vadd.f32 %v69, %v128
    %v130 = vpop.f32.mrf.mxu0
    %131 = vdwg.mxu0
    %v132 = vmax.f32 %v129, 0.0
    %v133 = vpack.c.bf16 %v132, %v132
    %v134 = vld [vmem:[#allocation2] sm:$0xf]
    %v135 = vld [vmem:[#allocation2 + $0x4] sm:$0xf]
    %v136 = vld [vmem:[#allocation2 + $0x8] sm:$0xf]
    %v137 = vld [vmem:[#allocation2 + $0xc] sm:$0xf]
    %v138 = vld [vmem:[#allocation2 + $0x10] sm:$0xf]
    %v139 = vld [vmem:[#allocation2 + $0x14] sm:$0xf]
    %v140 = vld [vmem:[#allocation2 + $0x18] sm:$0xf]
    %v141 = vld [vmem:[#allocation2 + $0x1c] sm:$0xf]
    %v142 = vld [vmem:[#allocation2 + $0x20] sm:$0xf]
    %v143 = vld [vmem:[#allocation2 + $0x24] sm:$0xf]
    %v144 = vld [vmem:[#allocation2 + $0x28] sm:$0xf]
    %v145 = vld [vmem:[#allocation2 + $0x2c] sm:$0xf]
    %v146 = vld [vmem:[#allocation2 + $0x30] sm:$0xf]
    %v147 = vld [vmem:[#allocation2 + $0x34] sm:$0xf]
    %v148 = vld [vmem:[#allocation2 + $0x38] sm:$0xf]
    %v149 = vld [vmem:[#allocation2 + $0x3c] sm:$0xf]
    %v150 = vld [vmem:[%s4] sm:$0x1]
    %v152 = vperm.slane %v150, 0
    %v170 = vunpack.c.l.b16 %v134
    %v171 = vunpack.c.l.b16 %v135
    %v172 = vunpack.c.l.b16 %v136
    %v173 = vunpack.c.l.b16 %v137
    %v174 = vunpack.c.l.b16 %v138
    %v175 = vunpack.c.l.b16 %v139
    %v176 = vunpack.c.l.b16 %v140
    %v177 = vunpack.c.l.b16 %v141
    %v178 = vunpack.c.l.b16 %v142
    %v179 = vunpack.c.l.b16 %v143
    %v180 = vunpack.c.l.b16 %v144
    %v181 = vunpack.c.l.b16 %v145
    %v182 = vunpack.c.l.b16 %v146
    %v183 = vunpack.c.l.b16 %v147
    %v184 = vunpack.c.l.b16 %v148
    %v185 = vunpack.c.l.b16 %v149
    %v186 = vpack.c.b16 %v171, %v170
    %v187 = vpack.c.b16 %v173, %v172
    %v188 = vpack.c.b16 %v175, %v174
    %v189 = vpack.c.b16 %v177, %v176
    %v190 = vpack.c.b16 %v179, %v178
    %v191 = vpack.c.b16 %v181, %v180
    %v192 = vpack.c.b16 %v183, %v182
    %v193 = vpack.c.b16 %v185, %v184
    %202 = vmatpush.bf16.msra.mxu0 %v193
    %203 = vmatpush.bf16.msra.mxu0 %v192
    %204 = vmatpush.bf16.msra.mxu0 %v191
    %205 = vmatpush.bf16.msra.mxu0 %v190
    %206 = vmatpush.bf16.msra.mxu0 %v189
    %207 = vmatpush.bf16.msra.mxu0 %v188
    %208 = vmatpush.bf16.msra.mxu0 %v187
    %209 = vmatpush.bf16.msra.mxu0 %v186
    %210 = vmatmul.bf16.gmra.mxu0 %v133
    %v211 = vpop.f32.mrf.mxu0
    %v212 = vadd.f32 %v152, %v211
    %v213 = vpop.f32.mrf.mxu0
    %214 = vdwg.mxu0
    %v215 = vmax.f32 %v212, 0.0
    %v216 = vpack.c.bf16 %v215, %v215
    %v217 = vld [vmem:[%s5] sm:$0xf]
    %v218 = vld [vmem:[%s5 + $0x4] sm:$0xf]
    %v219 = vld [vmem:[%s5 + $0x8] sm:$0xf]
    %v220 = vld [vmem:[%s5 + $0xc] sm:$0xf]
    %v221 = vld [vmem:[%s5 + $0x10] sm:$0xf]
    %v222 = vld [vmem:[%s5 + $0x14] sm:$0xf]
    %v223 = vld [vmem:[%s5 + $0x18] sm:$0xf]
    %v224 = vld [vmem:[%s5 + $0x1c] sm:$0xf]
    %v225 = vld [vmem:[%s5 + $0x20] sm:$0xf]
    %v226 = vld [vmem:[%s5 + $0x24] sm:$0xf]
    %v227 = vld [vmem:[%s5 + $0x28] sm:$0xf]
    %v228 = vld [vmem:[%s5 + $0x2c] sm:$0xf]
    %v229 = vld [vmem:[%s5 + $0x30] sm:$0xf]
    %v230 = vld [vmem:[%s5 + $0x34] sm:$0xf]
    %v231 = vld [vmem:[%s5 + $0x38] sm:$0xf]
    %v232 = vld [vmem:[%s5 + $0x3c] sm:$0xf]
    %v233 = vld [vmem:[%s6] sm:$0x1]
    %v235 = vperm.slane %v233, 0
    %v253 = vunpack.c.l.b16 %v217
    %v254 = vunpack.c.l.b16 %v218
    %v255 = vunpack.c.l.b16 %v219
    %v256 = vunpack.c.l.b16 %v220
    %v257 = vunpack.c.l.b16 %v221
    %v258 = vunpack.c.l.b16 %v222
    %v259 = vunpack.c.l.b16 %v223
    %v260 = vunpack.c.l.b16 %v224
    %v261 = vunpack.c.l.b16 %v225
    %v262 = vunpack.c.l.b16 %v226
    %v263 = vunpack.c.l.b16 %v227
    %v264 = vunpack.c.l.b16 %v228
    %v265 = vunpack.c.l.b16 %v229
    %v266 = vunpack.c.l.b16 %v230
    %v267 = vunpack.c.l.b16 %v231
    %v268 = vunpack.c.l.b16 %v232
    %v269 = vpack.c.b16 %v254, %v253
    %v270 = vpack.c.b16 %v256, %v255
    %v271 = vpack.c.b16 %v258, %v257
    %v272 = vpack.c.b16 %v260, %v259
    %v273 = vpack.c.b16 %v262, %v261
    %v274 = vpack.c.b16 %v264, %v263
    %v275 = vpack.c.b16 %v266, %v265
    %v276 = vpack.c.b16 %v268, %v267
    %285 = vmatpush.bf16.msra.mxu0 %v276
    %286 = vmatpush.bf16.msra.mxu0 %v275
    %287 = vmatpush.bf16.msra.mxu0 %v274
    %288 = vmatpush.bf16.msra.mxu0 %v273
    %289 = vmatpush.bf16.msra.mxu0 %v272
    %290 = vmatpush.bf16.msra.mxu0 %v271
    %291 = vmatpush.bf16.msra.mxu0 %v270
    %292 = vmatpush.bf16.msra.mxu0 %v269
    %293 = vmatmul.bf16.gmra.mxu0 %v216
    %v294 = vpop.f32.mrf.mxu0
    %v295 = vadd.f32 %v235, %v294
    %v296 = vpop.f32.mrf.mxu0
    %297 = vdwg.mxu0
    %vm298 = vcmask 254976
    %299 = vst.msk [vmem:[#allocation5] sm:$0x3] %vm298, %v295
    // Predicated region
    $region34: #{tpu_custom_call.1} parent=1 // pred_check
      _
    $region35: #{tpu_custom_call.1} parent=1 // pred_check_branch
      %301 = sbr.rel (0) target = $region37
    $region36: #{tpu_custom_call.1} parent=1 // pred_region
      %303 = vsyncadd [#allocation4], 0
      %s305 = sshll.u32 [#allocation5], 4
      %s306 = int_to_ptr.vmem [resolvable:$true] %s305
      %s307 = sshll.u32 %s7, 4
      %s308 = int_to_ptr.hbm [resolvable:$true] %s307
      %310 = dma.vmem_to_hbm [thread:$0]  %s306, 32, %s308, [#allocation4]
    $region37: #{tpu_custom_call.1} parent=1 // pred_fallthru
      _
    // Predicated region
    $region38: #{tpu_custom_call.1} parent=1 // pred_check
      _
    $region39: #{tpu_custom_call.1} parent=1 // pred_check_branch
      %312 = sbr.rel (0) target = $region41
    $region40: #{tpu_custom_call.1} parent=1 // pred_region
      %314 = dma.done [#allocation4], 32
    $region41: #{tpu_custom_call.1} parent=1 // pred_fallthru
      _
    %315 = vsyncpa [#allocation3], 1
    %316 = vsyncpa [#allocation4], 1

// kernel: tpu_custom_call.1
$region0: #{tpu_custom_call.1}
  #allocation0 [shape = 'u32[]', space=smem, size = 0x4, offset = 0x4, fixed_abs, tag = 'smem constant byte address 0x4 - core index']
  #allocation1 [shape = 'u32[72,128]{1,0:T(1,128)}', space=vmem, size = 0x9000, scoped, tag = 'internal scratch']
  %s0 = inlined_call_operand.vmem [shape: f32[2,36], index: 0, kind: input, shape index: {}]
  %s1 = inlined_call_operand.vmem [shape: bf16[128,128], index: 1, kind: input, shape index: {}]
  %s2 = inlined_call_operand.vmem [shape: f32[1,128], index: 2, kind: input, shape index: {}]
  %s3 = inlined_call_operand.hbm [shape: bf16[128,128], index: 3, kind: input, shape index: {}]
  %s4 = inlined_call_operand.vmem [shape: f32[1,128], index: 4, kind: input, shape index: {}]
  %s5 = inlined_call_operand.vmem [shape: bf16[128,32], index: 5, kind: input, shape index: {}]
  %s6 = inlined_call_operand.vmem [shape: f32[1,32], index: 6, kind: input, shape index: {}]
  %s7 = inlined_call_operand.hbm [shape: f32[2,32], index: 7, kind: output, shape index: {}]
  %s8 = sld [smem:[#allocation0]]
  $region42: #{tpu_custom_call.1} parent=0
    _
  %s10 = ssub.s32 1, %s8
  %s11 = scalar_select 0, %s10, %s8
  $region1: #{tpu_custom_call.1} parent=0
    #allocation2 [shape = 'u8[32768]{0}', space=vmem, size = 0x8000, scoped, tag = 'input window, operand 3, single buffered']
    #allocation3 [shape = 's32[1]{0}', space=sflag, size = 0x4, scoped, tag = 'scoped memory for tpu_custom_call.1']
    #allocation4 [shape = 's32[1]{0}', space=sflag, size = 0x4, scoped, tag = 'scoped memory for tpu_custom_call.1']
    #allocation5 [shape = 'u8[1024]{0}', space=vmem, size = 0x400, scoped, tag = 'output window, operand 0, single buffered']
    %12 = vsyncpa [#allocation3], 0
    %13 = vsyncpa [#allocation4], 0
    // Predicated region
    $region2: #{tpu_custom_call.1} parent=1 // pred_check
      _
    $region3: #{tpu_custom_call.1} parent=1 // pred_check_branch
      %15 = sbr.rel (0) target = $region5
    $region4: #{tpu_custom_call.1} parent=1 // pred_region
      _
    $region5: #{tpu_custom_call.1} parent=1 // pred_fallthru
      _
    // Predicated region
    $region6: #{tpu_custom_call.1} parent=1 // pred_check
      _
    $region7: #{tpu_custom_call.1} parent=1 // pred_check_branch
      %17 = sbr.rel (0) target = $region9
    $region8: #{tpu_custom_call.1} parent=1 // pred_region
      _
    $region9: #{tpu_custom_call.1} parent=1 // pred_fallthru
      _
    // Predicated region
    $region10: #{tpu_custom_call.1} parent=1 // pred_check
      _
    $region11: #{tpu_custom_call.1} parent=1 // pred_check_branch
      %19 = sbr.rel (0) target = $region13
    $region12: #{tpu_custom_call.1} parent=1 // pred_region
      _
    $region13: #{tpu_custom_call.1} parent=1 // pred_fallthru
      _
    // Predicated region
    $region14: #{tpu_custom_call.1} parent=1 // pred_check
      _
    $region15: #{tpu_custom_call.1} parent=1 // pred_check_branch
      %21 = sbr.rel (0) target = $region17
    $region16: #{tpu_custom_call.1} parent=1 // pred_region
      %23 = vsyncadd [#allocation3], 0
      %s24 = sshll.u32 %s3, 4
      %s25 = int_to_ptr.hbm [resolvable:$true] %s24
      %s26 = sshll.u32 [#allocation2], 4
      %s27 = int_to_ptr.vmem [resolvable:$true] %s26
      %32 = dma.hbm_to_vmem [thread:$0]  %s25, 1024, %s27, [#allocation3], 64, 64, 4
    $region17: #{tpu_custom_call.1} parent=1 // pred_fallthru
      _
    // Predicated region
    $region18: #{tpu_custom_call.1} parent=1 // pred_check
      _
    $region19: #{tpu_custom_call.1} parent=1 // pred_check_branch
      %34 = sbr.rel (0) target = $region21
    $region20: #{tpu_custom_call.1} parent=1 // pred_region
      _
    $region21: #{tpu_custom_call.1} parent=1 // pred_fallthru
      _
    // Predicated region
    $region22: #{tpu_custom_call.1} parent=1 // pred_check
      _
    $region23: #{tpu_custom_call.1} parent=1 // pred_check_branch
      %36 = sbr.rel (0) target = $region25
    $region24: #{tpu_custom_call.1} parent=1 // pred_region
      _
    $region25: #{tpu_custom_call.1} parent=1 // pred_fallthru
      _
    // Predicated region
    $region26: #{tpu_custom_call.1} parent=1 // pred_check
      _
    $region27: #{tpu_custom_call.1} parent=1 // pred_check_branch
      %38 = sbr.rel (0) target = $region29
    $region28: #{tpu_custom_call.1} parent=1 // pred_region
      _
    $region29: #{tpu_custom_call.1} parent=1 // pred_fallthru
      _
    // Predicated region
    $region30: #{tpu_custom_call.1} parent=1 // pred_check
      _
    $region31: #{tpu_custom_call.1} parent=1 // pred_check_branch
      %40 = sbr.rel (0) target = $region33
    $region32: #{tpu_custom_call.1} parent=1 // pred_region
      %42 = dma.done [#allocation3], 1024
    $region33: #{tpu_custom_call.1} parent=1 // pred_fallthru
      _
    %v44 = vld [vmem:[%s0] sm:$0x3]
    %v45 = vpack.c.bf16 %v44, %v44
    %vm46 = vcmask 293888
    %v49 = vsel %vm46, %v45, 0
    %v51 = vld [vmem:[%s1] sm:$0xf]
    %v52 = vld [vmem:[%s1 + $0x4] sm:$0xf]
    %v53 = vld [vmem:[%s1 + $0x8] sm:$0xf]
    %v54 = vld [vmem:[%s1 + $0xc] sm:$0xf]
    %v55 = vld [vmem:[%s1 + $0x10] sm:$0xf]
    %v56 = vld [vmem:[%s1 + $0x14] sm:$0xf]
    %v57 = vld [vmem:[%s1 + $0x18] sm:$0xf]
    %v58 = vld [vmem:[%s1 + $0x1c] sm:$0xf]
    %v59 = vld [vmem:[%s1 + $0x20] sm:$0xf]
    %v60 = vld [vmem:[%s1 + $0x24] sm:$0xf]
    %v61 = vld [vmem:[%s1 + $0x28] sm:$0xf]
    %v62 = vld [vmem:[%s1 + $0x2c] sm:$0xf]
    %v63 = vld [vmem:[%s1 + $0x30] sm:$0xf]
    %v64 = vld [vmem:[%s1 + $0x34] sm:$0xf]
    %v65 = vld [vmem:[%s1 + $0x38] sm:$0xf]
    %v66 = vld [vmem:[%s1 + $0x3c] sm:$0xf]
    %v67 = vld [vmem:[%s2] sm:$0x1]
    %v69 = vperm.slane %v67, 0
    %v87 = vunpack.c.l.b16 %v51
    %v88 = vunpack.c.l.b16 %v52
    %v89 = vunpack.c.l.b16 %v53
    %v90 = vunpack.c.l.b16 %v54
    %v91 = vunpack.c.l.b16 %v55
    %v92 = vunpack.c.l.b16 %v56
    %v93 = vunpack.c.l.b16 %v57
    %v94 = vunpack.c.l.b16 %v58
    %v95 = vunpack.c.l.b16 %v59
    %v96 = vunpack.c.l.b16 %v60
    %v97 = vunpack.c.l.b16 %v61
    %v98 = vunpack.c.l.b16 %v62
    %v99 = vunpack.c.l.b16 %v63
    %v100 = vunpack.c.l.b16 %v64
    %v101 = vunpack.c.l.b16 %v65
    %v102 = vunpack.c.l.b16 %v66
    %v103 = vpack.c.b16 %v88, %v87
    %v104 = vpack.c.b16 %v90, %v89
    %v105 = vpack.c.b16 %v92, %v91
    %v106 = vpack.c.b16 %v94, %v93
    %v107 = vpack.c.b16 %v96, %v95
    %v108 = vpack.c.b16 %v98, %v97
    %v109 = vpack.c.b16 %v100, %v99
    %v110 = vpack.c.b16 %v102, %v101
    %119 = vmatpush.bf16.msra.mxu0 %v110
    %120 = vmatpush.bf16.msra.mxu0 %v109
    %121 = vmatpush.bf16.msra.mxu0 %v108
    %122 = vmatpush.bf16.msra.mxu0 %v107
    %123 = vmatpush.bf16.msra.mxu0 %v106
    %124 = vmatpush.bf16.msra.mxu0 %v105
    %125 = vmatpush.bf16.msra.mxu0 %v104
    %126 = vmatpush.bf16.msra.mxu0 %v103
    %127 = vmatmul.bf16.gmra.mxu0 %v49
    %v128 = vpop.f32.mrf.mxu0
    %v129 = vadd.f32 %v69, %v128
    %v130 = vpop.f32.mrf.mxu0
    %131 = vdwg.mxu0
    %v132 = vmax.f32 %v129, 0.0
    %v133 = vpack.c.bf16 %v132, %v132
    %v134 = vld [vmem:[#allocation2] sm:$0xf]
    %v135 = vld [vmem:[#allocation2 + $0x4] sm:$0xf]
    %v136 = vld [vmem:[#allocation2 + $0x8] sm:$0xf]
    %v137 = vld [vmem:[#allocation2 + $0xc] sm:$0xf]
    %v138 = vld [vmem:[#allocation2 + $0x10] sm:$0xf]
    %v139 = vld [vmem:[#allocation2 + $0x14] sm:$0xf]
    %v140 = vld [vmem:[#allocation2 + $0x18] sm:$0xf]
    %v141 = vld [vmem:[#allocation2 + $0x1c] sm:$0xf]
    %v142 = vld [vmem:[#allocation2 + $0x20] sm:$0xf]
    %v143 = vld [vmem:[#allocation2 + $0x24] sm:$0xf]
    %v144 = vld [vmem:[#allocation2 + $0x28] sm:$0xf]
    %v145 = vld [vmem:[#allocation2 + $0x2c] sm:$0xf]
    %v146 = vld [vmem:[#allocation2 + $0x30] sm:$0xf]
    %v147 = vld [vmem:[#allocation2 + $0x34] sm:$0xf]
    %v148 = vld [vmem:[#allocation2 + $0x38] sm:$0xf]
    %v149 = vld [vmem:[#allocation2 + $0x3c] sm:$0xf]
    %v150 = vld [vmem:[%s4] sm:$0x1]
    %v152 = vperm.slane %v150, 0
    %v170 = vunpack.c.l.b16 %v134
    %v171 = vunpack.c.l.b16 %v135
    %v172 = vunpack.c.l.b16 %v136
    %v173 = vunpack.c.l.b16 %v137
    %v174 = vunpack.c.l.b16 %v138
    %v175 = vunpack.c.l.b16 %v139
    %v176 = vunpack.c.l.b16 %v140
    %v177 = vunpack.c.l.b16 %v141
    %v178 = vunpack.c.l.b16 %v142
    %v179 = vunpack.c.l.b16 %v143
    %v180 = vunpack.c.l.b16 %v144
    %v181 = vunpack.c.l.b16 %v145
    %v182 = vunpack.c.l.b16 %v146
    %v183 = vunpack.c.l.b16 %v147
    %v184 = vunpack.c.l.b16 %v148
    %v185 = vunpack.c.l.b16 %v149
    %v186 = vpack.c.b16 %v171, %v170
    %v187 = vpack.c.b16 %v173, %v172
    %v188 = vpack.c.b16 %v175, %v174
    %v189 = vpack.c.b16 %v177, %v176
    %v190 = vpack.c.b16 %v179, %v178
    %v191 = vpack.c.b16 %v181, %v180
    %v192 = vpack.c.b16 %v183, %v182
    %v193 = vpack.c.b16 %v185, %v184
    %202 = vmatpush.bf16.msra.mxu0 %v193
    %203 = vmatpush.bf16.msra.mxu0 %v192
    %204 = vmatpush.bf16.msra.mxu0 %v191
    %205 = vmatpush.bf16.msra.mxu0 %v190
    %206 = vmatpush.bf16.msra.mxu0 %v189
    %207 = vmatpush.bf16.msra.mxu0 %v188
    %208 = vmatpush.bf16.msra.mxu0 %v187
    %209 = vmatpush.bf16.msra.mxu0 %v186
    %210 = vmatmul.bf16.gmra.mxu0 %v133
    %v211 = vpop.f32.mrf.mxu0
    %v212 = vadd.f32 %v152, %v211
    %v213 = vpop.f32.mrf.mxu0
    %214 = vdwg.mxu0
    %v215 = vmax.f32 %v212, 0.0
    %v216 = vpack.c.bf16 %v215, %v215
    %v217 = vld [vmem:[%s5] sm:$0xf]
    %v218 = vld [vmem:[%s5 + $0x4] sm:$0xf]
    %v219 = vld [vmem:[%s5 + $0x8] sm:$0xf]
    %v220 = vld [vmem:[%s5 + $0xc] sm:$0xf]
    %v221 = vld [vmem:[%s5 + $0x10] sm:$0xf]
    %v222 = vld [vmem:[%s5 + $0x14] sm:$0xf]
    %v223 = vld [vmem:[%s5 + $0x18] sm:$0xf]
    %v224 = vld [vmem:[%s5 + $0x1c] sm:$0xf]
    %v225 = vld [vmem:[%s5 + $0x20] sm:$0xf]
    %v226 = vld [vmem:[%s5 + $0x24] sm:$0xf]
    %v227 = vld [vmem:[%s5 + $0x28] sm:$0xf]
    %v228 = vld [vmem:[%s5 + $0x2c] sm:$0xf]
    %v229 = vld [vmem:[%s5 + $0x30] sm:$0xf]
    %v230 = vld [vmem:[%s5 + $0x34] sm:$0xf]
    %v231 = vld [vmem:[%s5 + $0x38] sm:$0xf]
    %v232 = vld [vmem:[%s5 + $0x3c] sm:$0xf]
    %v233 = vld [vmem:[%s6] sm:$0x1]
    %v235 = vperm.slane %v233, 0
    %v253 = vunpack.c.l.b16 %v217
    %v254 = vunpack.c.l.b16 %v218
    %v255 = vunpack.c.l.b16 %v219
    %v256 = vunpack.c.l.b16 %v220
    %v257 = vunpack.c.l.b16 %v221
    %v258 = vunpack.c.l.b16 %v222
    %v259 = vunpack.c.l.b16 %v223
    %v260 = vunpack.c.l.b16 %v224
    %v261 = vunpack.c.l.b16 %v225
    %v262 = vunpack.c.l.b16 %v226
    %v263 = vunpack.c.l.b16 %v227
    %v264 = vunpack.c.l.b16 %v228
    %v265 = vunpack.c.l.b16 %v229
    %v266 = vunpack.c.l.b16 %v230
    %v267 = vunpack.c.l.b16 %v231
    %v268 = vunpack.c.l.b16 %v232
    %v269 = vpack.c.b16 %v254, %v253
    %v270 = vpack.c.b16 %v256, %v255
    %v271 = vpack.c.b16 %v258, %v257
    %v272 = vpack.c.b16 %v260, %v259
    %v273 = vpack.c.b16 %v262, %v261
    %v274 = vpack.c.b16 %v264, %v263
    %v275 = vpack.c.b16 %v266, %v265
    %v276 = vpack.c.b16 %v268, %v267
    %285 = vmatpush.bf16.msra.mxu0 %v276
    %286 = vmatpush.bf16.msra.mxu0 %v275
    %287 = vmatpush.bf16.msra.mxu0 %v274
    %288 = vmatpush.bf16.msra.mxu0 %v273
    %289 = vmatpush.bf16.msra.mxu0 %v272
    %290 = vmatpush.bf16.msra.mxu0 %v271
    %291 = vmatpush.bf16.msra.mxu0 %v270
    %292 = vmatpush.bf16.msra.mxu0 %v269
    %293 = vmatmul.bf16.gmra.mxu0 %v216
    %v294 = vpop.f32.mrf.mxu0
    %v295 = vadd.f32 %v235, %v294
    %v296 = vpop.f32.mrf.mxu0
    %297 = vdwg.mxu0
    %vm298 = vcmask 254976
    %299 = vst.msk [vmem:[#allocation5] sm:$0x3] %vm298, %v295
    // Predicated region
    $region34: #{tpu_custom_call.1} parent=1 // pred_check
      _
    $region35: #{tpu_custom_call.1} parent=1 // pred_check_branch
      %301 = sbr.rel (0) target = $region37
    $region36: #{tpu_custom_call.1} parent=1 // pred_region
      %303 = vsyncadd [#allocation4], 0
      %s305 = sshll.u32 [#allocation5], 4
      %s306 = int_to_ptr.vmem [resolvable:$true] %s305
      %s307 = sshll.u32 %s7, 4
      %s308 = int_to_ptr.hbm [resolvable:$true] %s307
      %310 = dma.vmem_to_hbm [thread:$0]  %s306, 32, %s308, [#allocation4]
    $region37: #{tpu_custom_call.1} parent=1 // pred_fallthru
      _
    // Predicated region
    $region38: #{tpu_custom_call.1} parent=1 // pred_check
      _
    $region39: #{tpu_custom_call.1} parent=1 // pred_check_branch
      %312 = sbr.rel (0) target = $region41
    $region40: #{tpu_custom_call.1} parent=1 // pred_region
      %314 = dma.done [#allocation4], 32
    $region41: #{tpu_custom_call.1} parent=1 // pred_fallthru
      _
    %315 = vsyncpa [#allocation3], 1
    %316 = vsyncpa [#allocation4], 1

</llo_original>
